<compile_context>
chip_gen: v7x
topology: tpu7x:2x2x1
jax: 0.10.0
libtpu: 0.0.40
codegen_flags: <defaults>
</compile_context>

<pallas_src>
import jax
import jax.numpy as jnp
import numpy as np
from jax.experimental import pallas as pl
from jax.experimental.pallas import tpu as pltpu


def _sage_mean_kernel(adj_ref, fsrc_ref, fdst_ref, wself_ref, wneigh_ref,
                      out_ref, acc_ref):
    # adj_ref   : (TN, TK)            int8 adjacency tile (dst rows x src cols), values 0/1
    # fsrc_ref  : (TK, D_in+1)        bf16 source-feature K tile, last column = 1 (degree)
    # fdst_ref  : (TN, D_in+1)        bf16 self-feature tile (same trailing ones column)
    # wself_ref : (D_in+1, D_out_pad) bf16 W_self^T, zero row for the ones column, lane-padded
    # wneigh_ref: (D_in+1, D_out_pad) bf16 W_neigh^T, zero row for the degree column
    # out_ref   : (TN, D_out_pad)     f32 output tile (lane-dense)
    # acc_ref   : (TN, D_in+1)        f32 scratch: neighbor sum + in-degree in last column
    k = pl.program_id(1)

    @pl.when(k == 0)
    def _():
        acc_ref[...] = jnp.zeros_like(acc_ref)

    # Single MXU call per K tile: neighbor sum AND in-degree (via the ones column).
    adj = adj_ref[...].astype(jnp.bfloat16)            # int8 {0,1} -> bf16, exact
    acc_ref[...] += jnp.dot(adj, fsrc_ref[...], preferred_element_type=jnp.float32)

    @pl.when(k == pl.num_programs(1) - 1)
    def _():
        acc = acc_ref[...]                              # (TN, D_in+1) f32
        deg = acc[:, -1:]                               # (TN, 1) exact in-degree
        # Exact mean; zero-in-degree rows stay 0 (acc row is 0, divide by 1).
        h_neigh = (acc / jnp.maximum(deg, 1.0)).astype(jnp.bfloat16)
        # Two short-K MXU dots summed in f32 (no lane-axis concat). The trailing
        # column of fdst / h_neigh multiplies a zero weight row -> no contribution.
        out = jnp.dot(fdst_ref[...], wself_ref[...], preferred_element_type=jnp.float32)
        out += jnp.dot(h_neigh, wneigh_ref[...], preferred_element_type=jnp.float32)
        out_ref[...] = out.astype(out_ref.dtype)


def sage_conv_mean(adj, feat, w_self, w_neigh, *, tile_n=256, tile_k=2048):
    """SAGEConv 'mean' forward.

    adj    : (N, N) float/int, adj[i, j] = 1 iff edge j -> i
    feat   : (N, D_in)
    w_self : (D_out, D_in)  fc_self.weight  (torch layout)
    w_neigh: (D_out, D_in)  fc_neigh.weight (torch layout)
    """
    adj = jnp.asarray(adj)
    feat = jnp.asarray(feat)
    N_dst, N_src = adj.shape
    N, D_in = feat.shape
    assert N == N_src == N_dst, "homogeneous graph: N_dst == N_src == N assumed"
    D_out = w_self.shape[0]

    tile_n = min(tile_n, N_dst)
    tile_k = min(tile_k, N_src)
    # Keep >= 2 dst tiles so the "parallel" grid axis can shard across the two
    # TensorCores on v7x (losing the split there is a 2x regression).
    while tile_n > 8 and N_dst // tile_n < 2:
        tile_n //= 2
    assert N_dst % tile_n == 0 and N_src % tile_k == 0

    d_out_pad = ((D_out + 127) // 128) * 128

    # Features in bf16 with a trailing ones column so the in-degree is accumulated
    # on the MXU as part of the neighbor-sum matmul.
    feat_p = jnp.concatenate(
        [feat.astype(jnp.bfloat16), jnp.ones((N, 1), jnp.bfloat16)], axis=1)  # (N, D_in+1)

    def pad_w(w):
        # (D_out, D_in) torch layout -> (D_in+1, D_out_pad) bf16, zero row at index D_in
        # (absorbs the ones/degree column) and zero lane padding up to a 128 multiple.
        wt = jnp.asarray(w).T.astype(jnp.float32)                 # (D_in, D_out)
        wt = jnp.pad(wt, ((0, 1), (0, d_out_pad - D_out)))
        return wt.astype(jnp.bfloat16)

    w_self_p = pad_w(w_self)
    w_neigh_p = pad_w(w_neigh)

    # int8 adjacency in HBM (values are exactly 0/1): halves the dominant O(N^2)
    # HBM stream vs bf16 on all generations; widened to bf16 in-kernel for the MXU.
    adj_i8 = adj.astype(jnp.int8)

    grid = (N_dst // tile_n, N_src // tile_k)

    out_pad = pl.pallas_call(
        _sage_mean_kernel,
        out_shape=jax.ShapeDtypeStruct((N_dst, d_out_pad), jnp.float32),
        grid_spec=pltpu.PrefetchScalarGridSpec(
            num_scalar_prefetch=0,
            grid=grid,
            in_specs=[
                pl.BlockSpec((tile_n, tile_k), lambda i, k: (i, k)),        # adj tile (int8)
                pl.BlockSpec((tile_k, D_in + 1), lambda i, k: (k, 0)),      # feat_src K tile
                pl.BlockSpec((tile_n, D_in + 1), lambda i, k: (i, 0)),      # feat_dst (self) tile
                pl.BlockSpec((D_in + 1, d_out_pad), lambda i, k: (0, 0)),   # W_self^T, resident
                pl.BlockSpec((D_in + 1, d_out_pad), lambda i, k: (0, 0)),   # W_neigh^T, resident
            ],
            out_specs=pl.BlockSpec((tile_n, d_out_pad), lambda i, k: (i, 0)),
            scratch_shapes=[
                pltpu.VMEM((tile_n, D_in + 1), jnp.float32),   # neighbor-sum + degree accumulator
            ],
        ),
        # A few MiB of VMEM needed -> default scoped limit is ample on v5e/v6e/v7x;
        # no vmem_limit_bytes override (64 MiB was the whole physical VMEM on v7x).
        compiler_params=pltpu.CompilerParams(
            dimension_semantics=("parallel", "arbitrary"),
        ),
    )(adj_i8, feat_p, feat_p, w_self_p, w_neigh_p)

    return out_pad[:, :D_out].astype(feat.dtype)


def xavier_uniform(key, out_f, in_f, gain):
    bound = gain * np.sqrt(6.0 / (in_f + out_f))
    return jax.random.uniform(key, (out_f, in_f), jnp.float32, -bound, bound)


if __name__ == "__main__":
    N, D_in, D_out = 256, 32, 32
    key = jax.random.PRNGKey(0)
    k_adj, k_feat, k_ws, k_wn = jax.random.split(key, 4)

    # Deterministic random graph (dense adjacency); some nodes have zero in-degree.
    adj = (jax.random.uniform(k_adj, (N, N)) < 0.10).astype(jnp.float32)
    feat = jax.random.normal(k_feat, (N, D_in), jnp.float32)

    # reset_parameters(): xavier_uniform_ with gain = calculate_gain('relu') = sqrt(2)
    gain = np.sqrt(2.0)
    w_self = xavier_uniform(k_ws, D_out, D_in, gain)    # fc_self.weight  (out, in)
    w_neigh = xavier_uniform(k_wn, D_out, D_in, gain)   # fc_neigh.weight (out, in)

    # Small demo shapes: tile_n=128 -> 2 parallel dst tiles, tile_k=128 -> 2 reduction steps
    # (exercises the accumulation path). Production defaults are tile_n=256, tile_k=2048.
    out = sage_conv_mean(adj, feat, w_self, w_neigh, tile_n=128, tile_k=128)
    out = jax.block_until_ready(out)

    # Pure-JAX reference mirroring the kernel's deliberate precision choices
    # (bf16 features/weights, exact 0/1 adjacency, f32 accumulation, h_neigh
    # rounded to bf16 before the output matmul).
    adj_f = adj.astype(jnp.float32)
    feat_b = feat.astype(jnp.bfloat16).astype(jnp.float32)
    ws_b = w_self.astype(jnp.bfloat16).astype(jnp.float32)
    wn_b = w_neigh.astype(jnp.bfloat16).astype(jnp.float32)
    deg = jnp.sum(adj_f, axis=-1, keepdims=True)
    h_neigh_ref = (adj_f @ feat_b) / jnp.maximum(deg, 1.0)
    h_neigh_ref = h_neigh_ref.astype(jnp.bfloat16).astype(jnp.float32)
    ref = feat_b @ ws_b.T + h_neigh_ref @ wn_b.T

    assert np.allclose(np.asarray(out), np.asarray(ref), rtol=1e-2, atol=1e-2)
    print("KERNEL_OK")
</pallas_src>

<mosaic_0001>
module attributes {stable_mosaic.version = 11 : i64} {
  func.func @_sage_mean_kernel(%arg0: i32, %arg1: i32, %arg2: memref<128x128xi8, #tpu.memory_space<vmem>>, %arg3: memref<128x33xbf16, #tpu.memory_space<vmem>>, %arg4: memref<128x33xbf16, #tpu.memory_space<vmem>>, %arg5: memref<33x128xbf16, #tpu.memory_space<vmem>>, %arg6: memref<33x128xbf16, #tpu.memory_space<vmem>>, %arg7: memref<128x128xf32, #tpu.memory_space<vmem>>, %arg8: memref<128x33xf32, #tpu.memory_space<vmem>>) attributes {dimension_semantics = [#tpu.dimension_semantics<parallel>, #tpu.dimension_semantics<arbitrary>], iteration_bounds = array<i64: 2, 2>, scalar_prefetch = 0 : i64, scratch_operands = 1 : i64, tpu.core_type = #tpu.core_type<tc>, window_params = [{transform_indices = @transform_0, window_bounds = array<i64: 128, 128>}, {transform_indices = @transform_1, window_bounds = array<i64: 128, 33>}, {transform_indices = @transform_2, window_bounds = array<i64: 128, 33>}, {pipeline_mode = #tpu.pipeline_mode<synchronous>, transform_indices = @transform_3, window_bounds = array<i64: 33, 128>}, {pipeline_mode = #tpu.pipeline_mode<synchronous>, transform_indices = @transform_4, window_bounds = array<i64: 33, 128>}, {transform_indices = @transform_5, window_bounds = array<i64: 128, 128>}]} {
    %c0_i32 = arith.constant 0 : i32
    %0 = arith.cmpi eq, %arg1, %c0_i32 : i32
    %1 = arith.extui %0 : i1 to i32
    %c0_i32_0 = arith.constant 0 : i32
    %2 = arith.cmpi ne, %1, %c0_i32_0 : i32
    scf.if %2 {
      %cst_9 = arith.constant 0.000000e+00 : f32
      %13 = vector.broadcast %cst_9 : f32 to vector<128x33xf32>
      %c0_10 = arith.constant 0 : index
      %c0_11 = arith.constant 0 : index
      %14 = vector.load %arg8[%c0_10, %c0_11] : memref<128x33xf32, #tpu.memory_space<vmem>>, vector<128x33xf32>
      tpu.vector_store %arg8[%c0_10, %c0_11], %13 {strides = array<i32>} : memref<128x33xf32, #tpu.memory_space<vmem>>, vector<128x33xf32>,
    } else {
    }
    %c0 = arith.constant 0 : index
    %c0_1 = arith.constant 0 : index
    %3 = vector.load %arg2[%c0, %c0_1] : memref<128x128xi8, #tpu.memory_space<vmem>>, vector<128x128xi8>
    %4 = arith.sitofp %3 : vector<128x128xi8> to vector<128x128xbf16>
    %c0_2 = arith.constant 0 : index
    %c0_3 = arith.constant 0 : index
    %5 = vector.load %arg8[%c0_2, %c0_3] : memref<128x33xf32, #tpu.memory_space<vmem>>, vector<128x33xf32>
    %c0_4 = arith.constant 0 : index
    %c0_5 = arith.constant 0 : index
    %6 = vector.load %arg3[%c0_4, %c0_5] : memref<128x33xbf16, #tpu.memory_space<vmem>>, vector<128x33xbf16>
    %cst = arith.constant dense<0.000000e+00> : vector<128x33xf32>
    %7 = tpu.matmul %4, %6, %cst {dimension_numbers = #tpu.dot_dimension_numbers<[1], [0], [0], [1], [0, 0, 1, 1], [], []>} : vector<128x128xbf16>, vector<128x33xbf16>, vector<128x33xf32> -> vector<128x33xf32>
    %8 = arith.addf %5, %7 : vector<128x33xf32>
    %c0_6 = arith.constant 0 : index
    %c0_7 = arith.constant 0 : index
    %9 = vector.load %arg8[%c0_6, %c0_7] : memref<128x33xf32, #tpu.memory_space<vmem>>, vector<128x33xf32>
    tpu.vector_store %arg8[%c0_6, %c0_7], %8 {strides = array<i32>} : memref<128x33xf32, #tpu.memory_space<vmem>>, vector<128x33xf32>,
    %c1_i32 = arith.constant 1 : i32
    %10 = arith.cmpi eq, %arg1, %c1_i32 : i32
    %11 = arith.extui %10 : i1 to i32
    %c0_i32_8 = arith.constant 0 : i32
    %12 = arith.cmpi ne, %11, %c0_i32_8 : i32
    scf.if %12 {
      %c0_9 = arith.constant 0 : index
      %c0_10 = arith.constant 0 : index
      %13 = vector.load %arg8[%c0_9, %c0_10] : memref<128x33xf32, #tpu.memory_space<vmem>>, vector<128x33xf32>
      %14 = vector.extract_strided_slice %13 {offsets = [0, 32], sizes = [128, 1], strides = [1, 1]} : vector<128x33xf32> to vector<128x1xf32>
      %cst_11 = arith.constant 1.000000e+00 : f32
      %15 = vector.broadcast %cst_11 : f32 to vector<128x1xf32>
      %16 = arith.maximumf %14, %15 : vector<128x1xf32>
      %17 = vector.broadcast %16 : vector<128x1xf32> to vector<128x33xf32>
      %18 = arith.divf %13, %17 : vector<128x33xf32>
      %19 = arith.truncf %18 : vector<128x33xf32> to vector<128x33xbf16>
      %c0_12 = arith.constant 0 : index
      %c0_13 = arith.constant 0 : index
      %20 = vector.load %arg4[%c0_12, %c0_13] : memref<128x33xbf16, #tpu.memory_space<vmem>>, vector<128x33xbf16>
      %c0_14 = arith.constant 0 : index
      %c0_15 = arith.constant 0 : index
      %21 = vector.load %arg5[%c0_14, %c0_15] : memref<33x128xbf16, #tpu.memory_space<vmem>>, vector<33x128xbf16>
      %cst_16 = arith.constant dense<0.000000e+00> : vector<128x128xf32>
      %22 = tpu.matmul %20, %21, %cst_16 {dimension_numbers = #tpu.dot_dimension_numbers<[1], [0], [0], [1], [0, 0, 1, 1], [], []>} : vector<128x33xbf16>, vector<33x128xbf16>, vector<128x128xf32> -> vector<128x128xf32>
      %c0_17 = arith.constant 0 : index
      %c0_18 = arith.constant 0 : index
      %23 = vector.load %arg6[%c0_17, %c0_18] : memref<33x128xbf16, #tpu.memory_space<vmem>>, vector<33x128xbf16>
      %cst_19 = arith.constant dense<0.000000e+00> : vector<128x128xf32>
      %24 = tpu.matmul %19, %23, %cst_19 {dimension_numbers = #tpu.dot_dimension_numbers<[1], [0], [0], [1], [0, 0, 1, 1], [], []>} : vector<128x33xbf16>, vector<33x128xbf16>, vector<128x128xf32> -> vector<128x128xf32>
      %25 = arith.addf %22, %24 : vector<128x128xf32>
      %c0_20 = arith.constant 0 : index
      %c0_21 = arith.constant 0 : index
      %26 = vector.load %arg7[%c0_20, %c0_21] : memref<128x128xf32, #tpu.memory_space<vmem>>, vector<128x128xf32>
      tpu.vector_store %arg7[%c0_20, %c0_21], %25 {strides = array<i32>} : memref<128x128xf32, #tpu.memory_space<vmem>>, vector<128x128xf32>,
    } else {
    }
    return
  }
  func.func @transform_0(%arg0: i32, %arg1: i32) -> (i32, i32) {
    %c0_i32 = arith.constant 0 : i32
    return %arg0, %arg1 : i32, i32
  }
  func.func @transform_1(%arg0: i32, %arg1: i32) -> (i32, i32) {
    %c0_i32 = arith.constant 0 : i32
    %c0_i32_0 = arith.constant 0 : i32
    return %arg1, %c0_i32 : i32, i32
  }
  func.func @transform_2(%arg0: i32, %arg1: i32) -> (i32, i32) {
    %c0_i32 = arith.constant 0 : i32
    %c0_i32_0 = arith.constant 0 : i32
    return %arg0, %c0_i32 : i32, i32
  }
  func.func @transform_3(%arg0: i32, %arg1: i32) -> (i32, i32) {
    %c0_i32 = arith.constant 0 : i32
    %c0_i32_0 = arith.constant 0 : i32
    %c0_i32_1 = arith.constant 0 : i32
    return %c0_i32, %c0_i32_0 : i32, i32
  }
  func.func @transform_4(%arg0: i32, %arg1: i32) -> (i32, i32) {
    %c0_i32 = arith.constant 0 : i32
    %c0_i32_0 = arith.constant 0 : i32
    %c0_i32_1 = arith.constant 0 : i32
    return %c0_i32, %c0_i32_0 : i32, i32
  }
  func.func @transform_5(%arg0: i32, %arg1: i32) -> (i32, i32) {
    %c0_i32 = arith.constant 0 : i32
    %c0_i32_0 = arith.constant 0 : i32
    return %arg0, %c0_i32 : i32, i32
  }
}

</mosaic_0001>

<llo_original>
// kernel: tpu_custom_call.1
$region0: #{tpu_custom_call.1}
  #allocation0 [shape = 'u32[]', space=smem, size = 0x4, offset = 0x4, fixed_abs, tag = 'smem constant byte address 0x4 - core index']
  #allocation1 [shape = 'u32[144,128]{1,0:T(1,128)}', space=vmem, size = 0x12000, scoped, tag = 'internal scratch']
  #allocation2 [shape = 'f32[128,33]{1,0:T(8,128)}', space=vmem, size = 0x10000, scoped, tag = 'scratch operand']
  %s0 = inlined_call_operand.vmem [shape: s8[256,256], index: 0, kind: input, shape index: {}]
  %s1 = inlined_call_operand.vmem [shape: bf16[256,33], index: 1, kind: input, shape index: {}]
  %s2 = inlined_call_operand.vmem [shape: bf16[256,33], index: 2, kind: input, shape index: {}]
  %s3 = inlined_call_operand.vmem [shape: bf16[33,128], index: 3, kind: input, shape index: {}]
  %s4 = inlined_call_operand.vmem [shape: bf16[33,128], index: 4, kind: input, shape index: {}]
  %s5 = inlined_call_operand.hbm [shape: f32[256,128], index: 5, kind: output, shape index: {}]
  %s6 = sld [smem:[#allocation0]]
  $region99: #{tpu_custom_call.1} parent=0
    _
  %s8 = ssub.s32 1, %s6
  %s9 = scalar_select 0, %s8, %s6
  $region1: #{tpu_custom_call.1} parent=0
    #allocation3 [shape = 'u8[32768]{0}', space=vmem, size = 0x8000, scoped, tag = 'input window, operand 0']
    #allocation4 [shape = 'u8[131072]{0}', space=vmem, size = 0x20000, scoped, tag = 'output window, operand 0']
    #allocation5 [shape = 's32[2]{0}', space=sflag, size = 0x8, scoped, tag = 'scoped memory for tpu_custom_call.1']
    %10 = vsyncpa [#allocation5], 0
    %s11 = scalar_lea.sflag [#allocation5], 1
    %12 = vsyncpa %s11, 0
    loop: start=0, step=1, limit=6
    $region2: #{tpu_custom_call.1} parent=1 // loop_pre_header
      _
    $region3: #{tpu_custom_call.1} parent=1 // loop_header
      %s14 = sphi 0, %s18
      %p15 = scmp.ge.s32.totalorder %s14, 6
      %s21 = sphi 0, %s33
      %s22 = sphi 0, %s29
      %s23 = sphi 0, %s21
      %s24 = sphi 0, %s22
      %s25 = sphi 0, %s23
      %s26 = sphi 0, %s24
      %s38 = sphi 0, %s40
      %s41 = sphi 0, %s38
      %s42 = sphi 0, %s41
      %s58 = sphi 0, %s42
      %s64 = sphi 0, %s66
      %s67 = sphi 0, %s64
      %s68 = sphi 0, %s67
      %s84 = sphi 0, %s68
      %s90 = sphi 0, %s92
      %s93 = sphi 0, %s90
      %s94 = sphi 0, %s93
      %s110 = sphi 0, %s94
      %s114 = sphi 0, %s114
      %s116 = sphi 0, %s114
      %s117 = sphi 0, %s116
      %s131 = sphi 0, %s117
      %s135 = sphi 0, %s135
      %s137 = sphi 0, %s135
      %s138 = sphi 0, %s137
      %s152 = sphi 0, %s138
      %s158 = sphi 0, %s160
      %s161 = sphi 0, %s158
      %s162 = sphi 0, %s161
      %s178 = sphi 0, %s162
    $region4: #{tpu_custom_call.1} parent=1 // loop_header_branch
      %17 = sbr.rel (%p15) target = $region8
    $region5: #{tpu_custom_call.1} parent=1 // loop_body
      %s19 = ssub.s32 %s14, 1
      %s20 = ssub.s32 %s14, 2
      %s27 = sadd.s32 1, %s22
      %p28 = scmp.ge.s32.totalorder %s27, 2
      %s29 = scalar_select %p28, 0, %s27
      %s30 = sadd.s32 1, %s21
      %s31 = scalar_select %p28, %s30, %s21
      %p32 = scmp.ge.s32.totalorder %s31, 2
      %s33 = scalar_select %p32, 0, %s31
      %s34 = ssub.s32 %s21, %s33
      %s35 = ssub.s32 %s22, %s29
      %s36 = sor.u32 %s34, %s35
      %p37 = scmp.eq.s32.totalorder %s36, 0
      %s39 = sadd.s32 %s38, 1
      %s40 = scalar_select %p37, %s38, %s39
      %p43 = pneg %p37
      %p44 = scmp.eq.s32.totalorder %s14, 3
      %p45 = por %p43, %p44
      %p46 = scmp.ne.s32.totalorder %s38, %s41
      %p47 = scmp.eq.s32.totalorder %s14, 0
      %p48 = por %p46, %p47
      %p49 = scmp.ne.s32.totalorder %s38, %s41
      %p50 = scmp.eq.s32.totalorder %s19, 3
      %p51 = por %p49, %p50
      %p52 = scmp.ne.s32.totalorder %s41, %s42
      %p53 = scmp.eq.s32.totalorder %s19, 0
      %p54 = por %p52, %p53
      %p55 = scmp.ne.s32.totalorder %s41, %s42
      %p56 = scmp.eq.s32.totalorder %s20, 3
      %p57 = por %p55, %p56
      %p59 = scmp.ne.s32.totalorder %s42, %s58
      %p60 = scmp.eq.s32.totalorder %s20, 0
      %p61 = por %p59, %p60
      %s62 = ssub.s32 %s22, %s29
      %p63 = scmp.eq.s32.totalorder %s62, 0
      %s65 = sadd.s32 %s64, 1
      %s66 = scalar_select %p63, %s64, %s65
      %p69 = pneg %p63
      %p70 = scmp.eq.s32.totalorder %s14, 3
      %p71 = por %p69, %p70
      %p72 = scmp.ne.s32.totalorder %s64, %s67
      %p73 = scmp.eq.s32.totalorder %s14, 0
      %p74 = por %p72, %p73
      %p75 = scmp.ne.s32.totalorder %s64, %s67
      %p76 = scmp.eq.s32.totalorder %s19, 3
      %p77 = por %p75, %p76
      %p78 = scmp.ne.s32.totalorder %s67, %s68
      %p79 = scmp.eq.s32.totalorder %s19, 0
      %p80 = por %p78, %p79
      %p81 = scmp.ne.s32.totalorder %s67, %s68
      %p82 = scmp.eq.s32.totalorder %s20, 3
      %p83 = por %p81, %p82
      %p85 = scmp.ne.s32.totalorder %s68, %s84
      %p86 = scmp.eq.s32.totalorder %s20, 0
      %p87 = por %p85, %p86
      %s88 = ssub.s32 %s21, %s33
      %p89 = scmp.eq.s32.totalorder %s88, 0
      %s91 = sadd.s32 %s90, 1
      %s92 = scalar_select %p89, %s90, %s91
      %p95 = pneg %p89
      %p96 = scmp.eq.s32.totalorder %s14, 3
      %p97 = por %p95, %p96
      %p98 = scmp.ne.s32.totalorder %s90, %s93
      %p99 = scmp.eq.s32.totalorder %s14, 0
      %p100 = por %p98, %p99
      %p101 = scmp.ne.s32.totalorder %s90, %s93
      %p102 = scmp.eq.s32.totalorder %s19, 3
      %p103 = por %p101, %p102
      %p104 = scmp.ne.s32.totalorder %s93, %s94
      %p105 = scmp.eq.s32.totalorder %s19, 0
      %p106 = por %p104, %p105
      %p107 = scmp.ne.s32.totalorder %s93, %s94
      %p108 = scmp.eq.s32.totalorder %s20, 3
      %p109 = por %p107, %p108
      %p111 = scmp.ne.s32.totalorder %s94, %s110
      %p112 = scmp.eq.s32.totalorder %s20, 0
      %p113 = por %p111, %p112
      %s115 = sadd.s32 %s114, 1
      %p118 = scmp.eq.s32.totalorder %s14, 3
      %p119 = scmp.ne.s32.totalorder %s114, %s116
      %p120 = scmp.eq.s32.totalorder %s14, 0
      %p121 = por %p119, %p120
      %p122 = scmp.ne.s32.totalorder %s114, %s116
      %p123 = scmp.eq.s32.totalorder %s19, 3
      %p124 = por %p122, %p123
      %p125 = scmp.ne.s32.totalorder %s116, %s117
      %p126 = scmp.eq.s32.totalorder %s19, 0
      %p127 = por %p125, %p126
      %p128 = scmp.ne.s32.totalorder %s116, %s117
      %p129 = scmp.eq.s32.totalorder %s20, 3
      %p130 = por %p128, %p129
      %p132 = scmp.ne.s32.totalorder %s117, %s131
      %p133 = scmp.eq.s32.totalorder %s20, 0
      %p134 = por %p132, %p133
      %s136 = sadd.s32 %s135, 1
      %p139 = scmp.eq.s32.totalorder %s14, 3
      %p140 = scmp.ne.s32.totalorder %s135, %s137
      %p141 = scmp.eq.s32.totalorder %s14, 0
      %p142 = por %p140, %p141
      %p143 = scmp.ne.s32.totalorder %s135, %s137
      %p144 = scmp.eq.s32.totalorder %s19, 3
      %p145 = por %p143, %p144
      %p146 = scmp.ne.s32.totalorder %s137, %s138
      %p147 = scmp.eq.s32.totalorder %s19, 0
      %p148 = por %p146, %p147
      %p149 = scmp.ne.s32.totalorder %s137, %s138
      %p150 = scmp.eq.s32.totalorder %s20, 3
      %p151 = por %p149, %p150
      %p153 = scmp.ne.s32.totalorder %s138, %s152
      %p154 = scmp.eq.s32.totalorder %s20, 0
      %p155 = por %p153, %p154
      %s156 = ssub.s32 %s21, %s33
      %p157 = scmp.eq.s32.totalorder %s156, 0
      %s159 = sadd.s32 %s158, 1
      %s160 = scalar_select %p157, %s158, %s159
      %p163 = pneg %p157
      %p164 = scmp.eq.s32.totalorder %s14, 3
      %p165 = por %p163, %p164
      %p166 = scmp.ne.s32.totalorder %s158, %s161
      %p167 = scmp.eq.s32.totalorder %s14, 0
      %p168 = por %p166, %p167
      %p169 = scmp.ne.s32.totalorder %s158, %s161
      %p170 = scmp.eq.s32.totalorder %s19, 3
      %p171 = por %p169, %p170
      %p172 = scmp.ne.s32.totalorder %s161, %s162
      %p173 = scmp.eq.s32.totalorder %s19, 0
      %p174 = por %p172, %p173
      %p175 = scmp.ne.s32.totalorder %s161, %s162
      %p176 = scmp.eq.s32.totalorder %s20, 3
      %p177 = por %p175, %p176
      %p179 = scmp.ne.s32.totalorder %s162, %s178
      %p180 = scmp.eq.s32.totalorder %s20, 0
      %p181 = por %p179, %p180
      %p182 = scmp.le.s32.totalorder 1, %s14
      %p183 = scmp.lt.s32.totalorder %s14, 5
      %p184 = pnand %p182, %p183
      %p185 = pneg %p184
      // Predicated region
      $region9: #{tpu_custom_call.1} parent=5 // pred_check
        _
      $region10: #{tpu_custom_call.1} parent=5 // pred_check_branch
        %187 = sbr.rel (%p184) target = $region12
      $region11: #{tpu_custom_call.1} parent=5 // pred_region
        %s188 = ssub.s32 %s14, 1
        // Predicated region
        $region13: #{tpu_custom_call.1} parent=11 // pred_check
          %p189 = pneg %p127
        $region14: #{tpu_custom_call.1} parent=11 // pred_check_branch
          %191 = sbr.rel (%p189) target = $region16
        $region15: #{tpu_custom_call.1} parent=11 // pred_region
          _
        $region16: #{tpu_custom_call.1} parent=11 // pred_fallthru
          _
        // Predicated region
        $region17: #{tpu_custom_call.1} parent=11 // pred_check
          %p192 = pneg %p148
        $region18: #{tpu_custom_call.1} parent=11 // pred_check_branch
          %194 = sbr.rel (%p192) target = $region20
        $region19: #{tpu_custom_call.1} parent=11 // pred_region
          _
        $region20: #{tpu_custom_call.1} parent=11 // pred_fallthru
          _
      $region12: #{tpu_custom_call.1} parent=5 // pred_fallthru
        _
      %p195 = scmp.lt.s32.totalorder %s14, 4
      // Predicated region
      $region21: #{tpu_custom_call.1} parent=5 // pred_check
        %p196 = pneg %p195
      $region22: #{tpu_custom_call.1} parent=5 // pred_check_branch
        %198 = sbr.rel (%p196) target = $region24
      $region23: #{tpu_custom_call.1} parent=5 // pred_region
        // Predicated region
        $region25: #{tpu_custom_call.1} parent=23 // pred_check
          %p199 = pneg %p48
        $region26: #{tpu_custom_call.1} parent=23 // pred_check_branch
          %201 = sbr.rel (%p199) target = $region28
        $region27: #{tpu_custom_call.1} parent=23 // pred_region
          %s202 = sand.u32 %s38, 1
          %s203 = sand.u32 %s38, 1
          %s204 = smul.addr %s203, 32
          %s205 = scalar_lea.vmem [#allocation3], %s204
          %s206 = smul.u32 4, %s21
          %s207 = smul.addr %s206, 2
          %s208 = sadd.s32 %s22, %s207
          %s209 = smul.addr %s208, 8
          %s210 = scalar_lea.vmem %s0, %s209
          // Predicated region
          $region29: #{tpu_custom_call.1} parent=27 // pred_check
            _
          $region30: #{tpu_custom_call.1} parent=27 // pred_check_branch
            %212 = sbr.rel (0) target = $region32
          $region31: #{tpu_custom_call.1} parent=27 // pred_region
            // Predicated region
            $region33: #{tpu_custom_call.1} parent=31 // pred_check
              _
            $region34: #{tpu_custom_call.1} parent=31 // pred_check_branch
              %214 = sbr.rel (0) target = $region36
            $region35: #{tpu_custom_call.1} parent=31 // pred_region
              // Predicated region
              $region48: #{tpu_custom_call.1} parent=35 // pred_check
                _
              $region49: #{tpu_custom_call.1} parent=35 // pred_check_branch
                %235 = sbr.rel (0) target = $region51
              $region50: #{tpu_custom_call.1} parent=35 // pred_region
                loop: start=0, step=1, limit=1
                $region52: #{tpu_custom_call.1} parent=50 // loop_pre_header
                  _
                $region53: #{tpu_custom_call.1} parent=50 // loop_header
                  %s237 = sphi 0, %s241
                  %p238 = scmp.ge.s32.totalorder %s237, 1
                  %s242 = sphi %s210, %s210
                  %s243 = sphi %s205, %s205
                $region54: #{tpu_custom_call.1} parent=50 // loop_header_branch
                  %240 = sbr.rel (%p238) target = $region58
                $region55: #{tpu_custom_call.1} parent=50 // loop_body
                  %v244 = vld [vmem:[%s242] sm:$0xff]
                  %245 = vst [vmem:[%s243] sm:$0xff] %v244
                  %v246 = vld [vmem:[%s242 + $0x10] sm:$0xff]
                  %247 = vst [vmem:[%s243 + $0x8] sm:$0xff] %v246
                  %v248 = vld [vmem:[%s242 + $0x20] sm:$0xff]
                  %249 = vst [vmem:[%s243 + $0x10] sm:$0xff] %v248
                  %v250 = vld [vmem:[%s242 + $0x30] sm:$0xff]
                  %251 = vst [vmem:[%s243 + $0x18] sm:$0xff] %v250
                $region56: #{tpu_custom_call.1} parent=50 // loop_footer
                  %s241 = sadd.s32 1, %s237
                $region57: #{tpu_custom_call.1} parent=50 // loop_footer_branch
                  %236 = sbr.rel target = $region53
                $region58: #{tpu_custom_call.1} parent=50 // loop_exit
                  _
              $region51: #{tpu_custom_call.1} parent=35 // pred_fallthru
                _
              // Predicated region
              $region59: #{tpu_custom_call.1} parent=35 // pred_check
                _
              $region60: #{tpu_custom_call.1} parent=35 // pred_check_branch
                %253 = sbr.rel target = $region62
              $region61: #{tpu_custom_call.1} parent=35 // pred_region
                _
              $region62: #{tpu_custom_call.1} parent=35 // pred_fallthru
                _
            $region36: #{tpu_custom_call.1} parent=31 // pred_fallthru
              _
            // Predicated region
            $region37: #{tpu_custom_call.1} parent=31 // pred_check
              _
            $region38: #{tpu_custom_call.1} parent=31 // pred_check_branch
              %216 = sbr.rel target = $region40
            $region39: #{tpu_custom_call.1} parent=31 // pred_region
              loop: start=0, step=1, limit=1
              $region41: #{tpu_custom_call.1} parent=39 // loop_pre_header
                _
              $region42: #{tpu_custom_call.1} parent=39 // loop_header
                %s219 = sphi 0, %s223
                %p220 = scmp.ge.s32.totalorder %s219, 1
                %s224 = sphi %s210, %s210
                %s225 = sphi %s205, %s205
              $region43: #{tpu_custom_call.1} parent=39 // loop_header_branch
                %222 = sbr.rel (%p220) target = $region47
              $region44: #{tpu_custom_call.1} parent=39 // loop_body
                %v226 = vld [vmem:[%s224] sm:$0xff]
                %227 = vst [vmem:[%s225] sm:$0xff] %v226
                %v228 = vld [vmem:[%s224 + $0x10] sm:$0xff]
                %229 = vst [vmem:[%s225 + $0x8] sm:$0xff] %v228
                %v230 = vld [vmem:[%s224 + $0x20] sm:$0xff]
                %231 = vst [vmem:[%s225 + $0x10] sm:$0xff] %v230
                %v232 = vld [vmem:[%s224 + $0x30] sm:$0xff]
                %233 = vst [vmem:[%s225 + $0x18] sm:$0xff] %v232
              $region45: #{tpu_custom_call.1} parent=39 // loop_footer
                %s223 = sadd.s32 1, %s219
              $region46: #{tpu_custom_call.1} parent=39 // loop_footer_branch
                %218 = sbr.rel target = $region42
              $region47: #{tpu_custom_call.1} parent=39 // loop_exit
                _
            $region40: #{tpu_custom_call.1} parent=31 // pred_fallthru
              _
          $region32: #{tpu_custom_call.1} parent=27 // pred_fallthru
            _
          %254 = vnop
        $region28: #{tpu_custom_call.1} parent=23 // pred_fallthru
          _
        // Predicated region
        $region63: #{tpu_custom_call.1} parent=23 // pred_check
          %p255 = pneg %p74
        $region64: #{tpu_custom_call.1} parent=23 // pred_check_branch
          %257 = sbr.rel (%p255) target = $region66
        $region65: #{tpu_custom_call.1} parent=23 // pred_region
          %s258 = smul.u32 16, %s22
          %p259 = scmp.lt.s32.totalorder %s258, 31
          %s260 = scalar_select %p259, %s258, 31
          %s261 = smul.addr %s260, 4
          %s262 = scalar_lea.vmem %s1, %s261
          %s263 = smul.u32 16, %s22
        $region66: #{tpu_custom_call.1} parent=23 // pred_fallthru
          _
        // Predicated region
        $region67: #{tpu_custom_call.1} parent=23 // pred_check
          %p264 = pneg %p100
        $region68: #{tpu_custom_call.1} parent=23 // pred_check_branch
          %266 = sbr.rel (%p264) target = $region70
        $region69: #{tpu_custom_call.1} parent=23 // pred_region
          %s267 = smul.u32 16, %s21
          %p268 = scmp.lt.s32.totalorder %s267, 31
          %s269 = scalar_select %p268, %s267, 31
          %s270 = smul.addr %s269, 4
          %s271 = scalar_lea.vmem %s2, %s270
          %s272 = smul.u32 16, %s21
        $region70: #{tpu_custom_call.1} parent=23 // pred_fallthru
          _
      $region24: #{tpu_custom_call.1} parent=5 // pred_fallthru
        _
      %p273 = scmp.le.s32.totalorder 1, %s14
      %p274 = scmp.lt.s32.totalorder %s14, 5
      %p275 = pnand %p273, %p274
      %p276 = pneg %p275
      // Predicated region
      $region71: #{tpu_custom_call.1} parent=5 // pred_check
        _
      $region72: #{tpu_custom_call.1} parent=5 // pred_check_branch
        %278 = sbr.rel (%p275) target = $region74
      $region73: #{tpu_custom_call.1} parent=5 // pred_region
        %s279 = ssub.s32 %s14, 1
        %s280 = sand.u32 %s41, 1
        %s281 = sand.u32 %s41, 1
        %s282 = smul.addr %s281, 32
        %s283 = scalar_lea.vmem [#allocation3], %s282
        // Predicated region
        $region75: #{tpu_custom_call.1} parent=73 // pred_check
          %p284 = pneg %p54
        $region76: #{tpu_custom_call.1} parent=73 // pred_check_branch
          %286 = sbr.rel (%p284) target = $region78
        $region77: #{tpu_custom_call.1} parent=73 // pred_region
          _
        $region78: #{tpu_custom_call.1} parent=73 // pred_fallthru
          _
        %s287 = sand.u32 %s41, 1
        %s288 = sand.u32 %s41, 1
        %s289 = smul.addr %s288, 32
        %s290 = scalar_lea.vmem [#allocation3], %s289
        %p291 = pneg %p54
        %p292 = pneg %p51
        %s293 = smul.u32 16, %s24
        %p294 = scmp.lt.s32.totalorder %s293, 31
        %s295 = scalar_select %p294, %s293, 31
        %s296 = smul.addr %s295, 4
        %s297 = scalar_lea.vmem %s1, %s296
        %p298 = pneg %p80
        %p299 = pneg %p77
        %s300 = smul.u32 16, %s23
        %p301 = scmp.lt.s32.totalorder %s300, 31
        %s302 = scalar_select %p301, %s300, 31
        %s303 = smul.addr %s302, 4
        %s304 = scalar_lea.vmem %s2, %s303
        %p305 = pneg %p106
        %p306 = pneg %p103
        %p307 = pneg %p127
        %p308 = pneg %p124
        %p309 = pneg %p148
        %p310 = pneg %p145
        %p311 = pneg %p174
        %p312 = pneg %p171
        %s313 = sand.u32 %s161, 1
        %s314 = scalar_lea.sflag [#allocation5], %s313
        %s315 = sand.u32 %s161, 1
        %s316 = smul.addr %s315, 128
        %s317 = scalar_lea.vmem [#allocation4], %s316
        %s318 = smul.u32 4, %s23
        %s319 = smul.u32 16, %s24
        %p320 = scmp.lt.s32.totalorder %s319, 31
        %s321 = scalar_select %p320, %s319, 31
        %s322 = smul.addr %s321, 4
        %s323 = scalar_lea.vmem %s1, %s322
        %s324 = smul.u32 16, %s24
        %s325 = smul.u32 16, %s23
        %p326 = scmp.lt.s32.totalorder %s325, 31
        %s327 = scalar_select %p326, %s325, 31
        %s328 = smul.addr %s327, 4
        %s329 = scalar_lea.vmem %s2, %s328
        %s330 = smul.u32 16, %s23
        %s331 = smul.u32 16, %s23
        %p333 = scmp.eq.s32.totalorder %s24, 0
        // Predicated region
        $region79: #{tpu_custom_call.1} parent=73 // pred_check
          %p334 = pneg %p333
        $region80: #{tpu_custom_call.1} parent=73 // pred_check_branch
          %336 = sbr.rel (%p334) target = $region82
        $region81: #{tpu_custom_call.1} parent=73 // pred_region
          %vm337 = vcmask 269312
          %338 = vst.msk [vmem:[#allocation2] sm:$0xff] %vm337, 0.0
          %339 = vst.msk [vmem:[#allocation2 + $0x8] sm:$0xff] %vm337, 0.0
          %340 = vst.msk [vmem:[#allocation2 + $0x10] sm:$0xff] %vm337, 0.0
          %341 = vst.msk [vmem:[#allocation2 + $0x18] sm:$0xff] %vm337, 0.0
          %342 = vst.msk [vmem:[#allocation2 + $0x20] sm:$0xff] %vm337, 0.0
          %343 = vst.msk [vmem:[#allocation2 + $0x28] sm:$0xff] %vm337, 0.0
          %344 = vst.msk [vmem:[#allocation2 + $0x30] sm:$0xff] %vm337, 0.0
          %345 = vst.msk [vmem:[#allocation2 + $0x38] sm:$0xff] %vm337, 0.0
          %346 = vst.msk [vmem:[#allocation2 + $0x40] sm:$0xff] %vm337, 0.0
          %347 = vst.msk [vmem:[#allocation2 + $0x48] sm:$0xff] %vm337, 0.0
          %348 = vst.msk [vmem:[#allocation2 + $0x50] sm:$0xff] %vm337, 0.0
          %349 = vst.msk [vmem:[#allocation2 + $0x58] sm:$0xff] %vm337, 0.0
          %350 = vst.msk [vmem:[#allocation2 + $0x60] sm:$0xff] %vm337, 0.0
          %351 = vst.msk [vmem:[#allocation2 + $0x68] sm:$0xff] %vm337, 0.0
          %352 = vst.msk [vmem:[#allocation2 + $0x70] sm:$0xff] %vm337, 0.0
          %353 = vst.msk [vmem:[#allocation2 + $0x78] sm:$0xff] %vm337, 0.0
        $region82: #{tpu_custom_call.1} parent=73 // pred_fallthru
          _
        %v354 = vld [vmem:[%s283] sm:$0xff]
        %v355 = vld [vmem:[%s283 + $0x8] sm:$0xff]
        %v356 = vld [vmem:[%s283 + $0x10] sm:$0xff]
        %v357 = vld [vmem:[%s283 + $0x18] sm:$0xff]
        %v358 = vunpack.c.l.s8.bf16 %v354
        %v359 = vunpack.c.h.s8.bf16 %v354
        %v360 = vunpack.c.l.s8.bf16 %v355
        %v361 = vunpack.c.h.s8.bf16 %v355
        %v362 = vunpack.c.l.s8.bf16 %v356
        %v363 = vunpack.c.h.s8.bf16 %v356
        %v364 = vunpack.c.l.s8.bf16 %v357
        %v365 = vunpack.c.h.s8.bf16 %v357
        %v366 = vld [vmem:[#allocation2] sm:$0xff]
        %v367 = vld [vmem:[#allocation2 + $0x8] sm:$0xff]
        %v368 = vld [vmem:[#allocation2 + $0x10] sm:$0xff]
        %v369 = vld [vmem:[#allocation2 + $0x18] sm:$0xff]
        %v370 = vld [vmem:[#allocation2 + $0x20] sm:$0xff]
        %v371 = vld [vmem:[#allocation2 + $0x28] sm:$0xff]
        %v372 = vld [vmem:[#allocation2 + $0x30] sm:$0xff]
        %v373 = vld [vmem:[#allocation2 + $0x38] sm:$0xff]
        %v374 = vld [vmem:[#allocation2 + $0x40] sm:$0xff]
        %v375 = vld [vmem:[#allocation2 + $0x48] sm:$0xff]
        %v376 = vld [vmem:[#allocation2 + $0x50] sm:$0xff]
        %v377 = vld [vmem:[#allocation2 + $0x58] sm:$0xff]
        %v378 = vld [vmem:[#allocation2 + $0x60] sm:$0xff]
        %v379 = vld [vmem:[#allocation2 + $0x68] sm:$0xff]
        %v380 = vld [vmem:[#allocation2 + $0x70] sm:$0xff]
        %v381 = vld [vmem:[#allocation2 + $0x78] sm:$0xff]
        %v382 = vld [vmem:[%s323] sm:$0xf]
        %v383 = vld [vmem:[%s323 + $0x4] sm:$0xf]
        %v384 = vld [vmem:[%s323 + $0x8] sm:$0xf]
        %v385 = vld [vmem:[%s323 + $0xc] sm:$0xf]
        %v386 = vld [vmem:[%s323 + $0x10] sm:$0xf]
        %v387 = vld [vmem:[%s323 + $0x14] sm:$0xf]
        %v388 = vld [vmem:[%s323 + $0x18] sm:$0xf]
        %v389 = vld [vmem:[%s323 + $0x1c] sm:$0xf]
        %v390 = vld [vmem:[%s323 + $0x20] sm:$0xf]
        %v391 = vld [vmem:[%s323 + $0x24] sm:$0xf]
        %v392 = vld [vmem:[%s323 + $0x28] sm:$0xf]
        %v393 = vld [vmem:[%s323 + $0x2c] sm:$0xf]
        %v394 = vld [vmem:[%s323 + $0x30] sm:$0xf]
        %v395 = vld [vmem:[%s323 + $0x34] sm:$0xf]
        %v396 = vld [vmem:[%s323 + $0x38] sm:$0xf]
        %v397 = vld [vmem:[%s323 + $0x3c] sm:$0xf]
        %v414 = vunpack.c.l.b16 %v382
        %v415 = vunpack.c.l.b16 %v383
        %v416 = vunpack.c.l.b16 %v384
        %v417 = vunpack.c.l.b16 %v385
        %v418 = vunpack.c.l.b16 %v386
        %v419 = vunpack.c.l.b16 %v387
        %v420 = vunpack.c.l.b16 %v388
        %v421 = vunpack.c.l.b16 %v389
        %v422 = vunpack.c.l.b16 %v390
        %v423 = vunpack.c.l.b16 %v391
        %v424 = vunpack.c.l.b16 %v392
        %v425 = vunpack.c.l.b16 %v393
        %v426 = vunpack.c.l.b16 %v394
        %v427 = vunpack.c.l.b16 %v395
        %v428 = vunpack.c.l.b16 %v396
        %v429 = vunpack.c.l.b16 %v397
        %v430 = vpack.c.b16 %v415, %v414
        %v431 = vpack.c.b16 %v417, %v416
        %v432 = vpack.c.b16 %v419, %v418
        %v433 = vpack.c.b16 %v421, %v420
        %v434 = vpack.c.b16 %v423, %v422
        %v435 = vpack.c.b16 %v425, %v424
        %v436 = vpack.c.b16 %v427, %v426
        %v437 = vpack.c.b16 %v429, %v428
        %446 = vmatprep.subr.bf16.mxu0 0
        %447 = vmatpush1.bf16.msra.mxu0 %v430
        %448 = vmatprep.subr.bf16.mxu0 0
        %449 = vmatpush1.bf16.msra.mxu0 %v431
        %450 = vmatprep.subr.bf16.mxu0 0
        %451 = vmatpush1.bf16.msra.mxu0 %v432
        %452 = vmatprep.subr.bf16.mxu0 0
        %453 = vmatpush1.bf16.msra.mxu0 %v433
        %454 = vmatprep.subr.bf16.mxu0 0
        %455 = vmatpush1.bf16.msra.mxu0 %v434
        %456 = vmatprep.subr.bf16.mxu0 0
        %457 = vmatpush1.bf16.msra.mxu0 %v435
        %458 = vmatprep.subr.bf16.mxu0 0
        %459 = vmatpush1.bf16.msra.mxu0 %v436
        %460 = vmatprep.subr.bf16.mxu0 0
        %461 = vmatpush1.bf16.msra.mxu0 %v437
        %462 = vmatprep.subr.bf16.mxu0 0
        %463 = vmatpush1.bf16.msra.mxu0 0
        %464 = vmatprep.subr.bf16.mxu0 0
        %465 = vmatpush1.bf16.msra.mxu0 0
        %466 = vmatprep.subr.bf16.mxu0 0
        %467 = vmatpush1.bf16.msra.mxu0 0
        %468 = vmatprep.subr.bf16.mxu0 0
        %469 = vmatpush1.bf16.msra.mxu0 0
        %470 = vmatprep.subr.bf16.mxu0 0
        %471 = vmatpush1.bf16.msra.mxu0 0
        %472 = vmatprep.subr.bf16.mxu0 0
        %473 = vmatpush1.bf16.msra.mxu0 0
        %474 = vmatprep.subr.bf16.mxu0 0
        %475 = vmatpush1.bf16.msra.mxu0 0
        %476 = vmatprep.subr.bf16.mxu0 0
        %477 = vmatpush1.bf16.msra.mxu0 0
        %478 = vmatprep.mubr.bf16.mxu0 0
        %479 = vmatmul.mubr.bf16.gmra.mrb[0].mxu0 %v358
        %v480 = vpop.f32.mrb[0].mxu0
        %v481 = vadd.f32 0.0, %v480
        %v482 = vpop.f32.mrb[0].mxu0
        %v483 = vpop.f32.mrb[0].mxu0
        %v484 = vadd.f32 0.0, %v483
        %v485 = vpop.f32.mrb[0].mxu0
        %486 = vmatprep.mubr.bf16.mxu0 0
        %487 = vmatmul.mubr.bf16.gmra.mrb[0].mxu0 %v359
        %v488 = vpop.f32.mrb[0].mxu0
        %v489 = vadd.f32 0.0, %v488
        %v490 = vpop.f32.mrb[0].mxu0
        %v491 = vpop.f32.mrb[0].mxu0
        %v492 = vadd.f32 0.0, %v491
        %v493 = vpop.f32.mrb[0].mxu0
        %494 = vmatprep.mubr.bf16.mxu0 0
        %495 = vmatmul.mubr.bf16.gmra.mrb[0].mxu0 %v360
        %v496 = vpop.f32.mrb[0].mxu0
        %v497 = vadd.f32 0.0, %v496
        %v498 = vpop.f32.mrb[0].mxu0
        %v499 = vpop.f32.mrb[0].mxu0
        %v500 = vadd.f32 0.0, %v499
        %v501 = vpop.f32.mrb[0].mxu0
        %502 = vmatprep.mubr.bf16.mxu0 0
        %503 = vmatmul.mubr.bf16.gmra.mrb[0].mxu0 %v361
        %v504 = vpop.f32.mrb[0].mxu0
        %v505 = vadd.f32 0.0, %v504
        %v506 = vpop.f32.mrb[0].mxu0
        %v507 = vpop.f32.mrb[0].mxu0
        %v508 = vadd.f32 0.0, %v507
        %v509 = vpop.f32.mrb[0].mxu0
        %510 = vmatprep.mubr.bf16.mxu0 0
        %511 = vmatmul.mubr.bf16.gmra.mrb[0].mxu0 %v362
        %v512 = vpop.f32.mrb[0].mxu0
        %v513 = vadd.f32 0.0, %v512
        %v514 = vpop.f32.mrb[0].mxu0
        %v515 = vpop.f32.mrb[0].mxu0
        %v516 = vadd.f32 0.0, %v515
        %v517 = vpop.f32.mrb[0].mxu0
        %518 = vmatprep.mubr.bf16.mxu0 0
        %519 = vmatmul.mubr.bf16.gmra.mrb[0].mxu0 %v363
        %v520 = vpop.f32.mrb[0].mxu0
        %v521 = vadd.f32 0.0, %v520
        %v522 = vpop.f32.mrb[0].mxu0
        %v523 = vpop.f32.mrb[0].mxu0
        %v524 = vadd.f32 0.0, %v523
        %v525 = vpop.f32.mrb[0].mxu0
        %526 = vmatprep.mubr.bf16.mxu0 0
        %527 = vmatmul.mubr.bf16.gmra.mrb[0].mxu0 %v364
        %v528 = vpop.f32.mrb[0].mxu0
        %v529 = vadd.f32 0.0, %v528
        %v530 = vpop.f32.mrb[0].mxu0
        %v531 = vpop.f32.mrb[0].mxu0
        %v532 = vadd.f32 0.0, %v531
        %v533 = vpop.f32.mrb[0].mxu0
        %534 = vmatprep.mubr.bf16.mxu0 0
        %535 = vmatmul.mubr.bf16.gmra.mrb[0].mxu0 %v365
        %v536 = vpop.f32.mrb[0].mxu0
        %v537 = vadd.f32 0.0, %v536
        %v538 = vpop.f32.mrb[0].mxu0
        %v539 = vpop.f32.mrb[0].mxu0
        %v540 = vadd.f32 0.0, %v539
        %v541 = vpop.f32.mrb[0].mxu0
        %542 = vdwg.mxu0
        %v543 = vadd.f32 %v366, %v481
        %v544 = vadd.f32 %v367, %v484
        %v545 = vadd.f32 %v368, %v489
        %v546 = vadd.f32 %v369, %v492
        %v547 = vadd.f32 %v370, %v497
        %v548 = vadd.f32 %v371, %v500
        %v549 = vadd.f32 %v372, %v505
        %v550 = vadd.f32 %v373, %v508
        %v551 = vadd.f32 %v374, %v513
        %v552 = vadd.f32 %v375, %v516
        %v553 = vadd.f32 %v376, %v521
        %v554 = vadd.f32 %v377, %v524
        %v555 = vadd.f32 %v378, %v529
        %v556 = vadd.f32 %v379, %v532
        %v557 = vadd.f32 %v380, %v537
        %v558 = vadd.f32 %v381, %v540
        %vm559 = vcmask 269312
        %560 = vst.msk [vmem:[#allocation2] sm:$0xff] %vm559, %v543
        %561 = vst.msk [vmem:[#allocation2 + $0x8] sm:$0xff] %vm559, %v544
        %562 = vst.msk [vmem:[#allocation2 + $0x10] sm:$0xff] %vm559, %v545
        %563 = vst.msk [vmem:[#allocation2 + $0x18] sm:$0xff] %vm559, %v546
        %564 = vst.msk [vmem:[#allocation2 + $0x20] sm:$0xff] %vm559, %v547
        %565 = vst.msk [vmem:[#allocation2 + $0x28] sm:$0xff] %vm559, %v548
        %566 = vst.msk [vmem:[#allocation2 + $0x30] sm:$0xff] %vm559, %v549
        %567 = vst.msk [vmem:[#allocation2 + $0x38] sm:$0xff] %vm559, %v550
        %568 = vst.msk [vmem:[#allocation2 + $0x40] sm:$0xff] %vm559, %v551
        %569 = vst.msk [vmem:[#allocation2 + $0x48] sm:$0xff] %vm559, %v552
        %570 = vst.msk [vmem:[#allocation2 + $0x50] sm:$0xff] %vm559, %v553
        %571 = vst.msk [vmem:[#allocation2 + $0x58] sm:$0xff] %vm559, %v554
        %572 = vst.msk [vmem:[#allocation2 + $0x60] sm:$0xff] %vm559, %v555
        %573 = vst.msk [vmem:[#allocation2 + $0x68] sm:$0xff] %vm559, %v556
        %574 = vst.msk [vmem:[#allocation2 + $0x70] sm:$0xff] %vm559, %v557
        %575 = vst.msk [vmem:[#allocation2 + $0x78] sm:$0xff] %vm559, %v558
        %p576 = scmp.eq.s32.totalorder %s24, 1
        // Predicated region
        $region83: #{tpu_custom_call.1} parent=73 // pred_check
          %p577 = pneg %p576
        $region84: #{tpu_custom_call.1} parent=73 // pred_check_branch
          %579 = sbr.rel (%p577) target = $region86
        $region85: #{tpu_custom_call.1} parent=73 // pred_region
          %v580 = vld [vmem:[#allocation2] sm:$0xff]
          %v581 = vld [vmem:[#allocation2 + $0x8] sm:$0xff]
          %v582 = vld [vmem:[#allocation2 + $0x10] sm:$0xff]
          %v583 = vld [vmem:[#allocation2 + $0x18] sm:$0xff]
          %v584 = vld [vmem:[#allocation2 + $0x20] sm:$0xff]
          %v585 = vld [vmem:[#allocation2 + $0x28] sm:$0xff]
          %v586 = vld [vmem:[#allocation2 + $0x30] sm:$0xff]
          %v587 = vld [vmem:[#allocation2 + $0x38] sm:$0xff]
          %v588 = vld [vmem:[#allocation2 + $0x40] sm:$0xff]
          %v589 = vld [vmem:[#allocation2 + $0x48] sm:$0xff]
          %v590 = vld [vmem:[#allocation2 + $0x50] sm:$0xff]
          %v591 = vld [vmem:[#allocation2 + $0x58] sm:$0xff]
          %v592 = vld [vmem:[#allocation2 + $0x60] sm:$0xff]
          %v593 = vld [vmem:[#allocation2 + $0x68] sm:$0xff]
          %v594 = vld [vmem:[#allocation2 + $0x70] sm:$0xff]
          %v595 = vld [vmem:[#allocation2 + $0x78] sm:$0xff]
          %v596 = vmax.f32 %v580, 1.0
          %v597 = vmax.f32 %v581, 1.0
          %v598 = vmax.f32 %v582, 1.0
          %v599 = vmax.f32 %v583, 1.0
          %v600 = vmax.f32 %v584, 1.0
          %v601 = vmax.f32 %v585, 1.0
          %v602 = vmax.f32 %v586, 1.0
          %v603 = vmax.f32 %v587, 1.0
          %v604 = vmax.f32 %v588, 1.0
          %v605 = vmax.f32 %v589, 1.0
          %v606 = vmax.f32 %v590, 1.0
          %v607 = vmax.f32 %v591, 1.0
          %v608 = vmax.f32 %v592, 1.0
          %v609 = vmax.f32 %v593, 1.0
          %v610 = vmax.f32 %v594, 1.0
          %v611 = vmax.f32 %v595, 1.0
          %613 = vset.pattern.permute.xlu0 32
          %614 = vperm.xlu0 %613, %v596
          %v615 = vpop.permute.xlu0 %614
          %618 = vset.pattern.permute.xlu0 32
          %619 = vperm.xlu0 %618, %v597
          %v620 = vpop.permute.xlu0 %619
          %623 = vset.pattern.permute.xlu0 32
          %624 = vperm.xlu0 %623, %v598
          %v625 = vpop.permute.xlu0 %624
          %628 = vset.pattern.permute.xlu0 32
          %629 = vperm.xlu0 %628, %v599
          %v630 = vpop.permute.xlu0 %629
          %633 = vset.pattern.permute.xlu0 32
          %634 = vperm.xlu0 %633, %v600
          %v635 = vpop.permute.xlu0 %634
          %638 = vset.pattern.permute.xlu0 32
          %639 = vperm.xlu0 %638, %v601
          %v640 = vpop.permute.xlu0 %639
          %643 = vset.pattern.permute.xlu0 32
          %644 = vperm.xlu0 %643, %v602
          %v645 = vpop.permute.xlu0 %644
          %648 = vset.pattern.permute.xlu0 32
          %649 = vperm.xlu0 %648, %v603
          %v650 = vpop.permute.xlu0 %649
          %653 = vset.pattern.permute.xlu0 32
          %654 = vperm.xlu0 %653, %v604
          %v655 = vpop.permute.xlu0 %654
          %658 = vset.pattern.permute.xlu0 32
          %659 = vperm.xlu0 %658, %v605
          %v660 = vpop.permute.xlu0 %659
          %663 = vset.pattern.permute.xlu0 32
          %664 = vperm.xlu0 %663, %v606
          %v665 = vpop.permute.xlu0 %664
          %668 = vset.pattern.permute.xlu0 32
          %669 = vperm.xlu0 %668, %v607
          %v670 = vpop.permute.xlu0 %669
          %673 = vset.pattern.permute.xlu0 32
          %674 = vperm.xlu0 %673, %v608
          %v675 = vpop.permute.xlu0 %674
          %678 = vset.pattern.permute.xlu0 32
          %679 = vperm.xlu0 %678, %v609
          %v680 = vpop.permute.xlu0 %679
          %683 = vset.pattern.permute.xlu0 32
          %684 = vperm.xlu0 %683, %v610
          %v685 = vpop.permute.xlu0 %684
          %688 = vset.pattern.permute.xlu0 32
          %689 = vperm.xlu0 %688, %v611
          %v690 = vpop.permute.xlu0 %689
          %v692 = vrcp.pop %v615
          %v693 = vmul.f32 %v580, %v692
          %v694 = vrcp.pop %v620
          %v695 = vmul.f32 %v581, %v694
          %v696 = vrcp.pop %v625
          %v697 = vmul.f32 %v582, %v696
          %v698 = vrcp.pop %v630
          %v699 = vmul.f32 %v583, %v698
          %v700 = vrcp.pop %v635
          %v701 = vmul.f32 %v584, %v700
          %v702 = vrcp.pop %v640
          %v703 = vmul.f32 %v585, %v702
          %v704 = vrcp.pop %v645
          %v705 = vmul.f32 %v586, %v704
          %v706 = vrcp.pop %v650
          %v707 = vmul.f32 %v587, %v706
          %v708 = vrcp.pop %v655
          %v709 = vmul.f32 %v588, %v708
          %v710 = vrcp.pop %v660
          %v711 = vmul.f32 %v589, %v710
          %v712 = vrcp.pop %v665
          %v713 = vmul.f32 %v590, %v712
          %v714 = vrcp.pop %v670
          %v715 = vmul.f32 %v591, %v714
          %v716 = vrcp.pop %v675
          %v717 = vmul.f32 %v592, %v716
          %v718 = vrcp.pop %v680
          %v719 = vmul.f32 %v593, %v718
          %v720 = vrcp.pop %v685
          %v721 = vmul.f32 %v594, %v720
          %v722 = vrcp.pop %v690
          %v723 = vmul.f32 %v595, %v722
          %v724 = vpack.c.bf16 %v695, %v693
          %v725 = vpack.c.bf16 %v699, %v697
          %v726 = vpack.c.bf16 %v703, %v701
          %v727 = vpack.c.bf16 %v707, %v705
          %v728 = vpack.c.bf16 %v711, %v709
          %v729 = vpack.c.bf16 %v715, %v713
          %v730 = vpack.c.bf16 %v719, %v717
          %v731 = vpack.c.bf16 %v723, %v721
          %v732 = vld [vmem:[%s329] sm:$0xf]
          %v733 = vld [vmem:[%s329 + $0x4] sm:$0xf]
          %v734 = vld [vmem:[%s329 + $0x8] sm:$0xf]
          %v735 = vld [vmem:[%s329 + $0xc] sm:$0xf]
          %v736 = vld [vmem:[%s329 + $0x10] sm:$0xf]
          %v737 = vld [vmem:[%s329 + $0x14] sm:$0xf]
          %v738 = vld [vmem:[%s329 + $0x18] sm:$0xf]
          %v739 = vld [vmem:[%s329 + $0x1c] sm:$0xf]
          %v740 = vld [vmem:[%s329 + $0x20] sm:$0xf]
          %v741 = vld [vmem:[%s329 + $0x24] sm:$0xf]
          %v742 = vld [vmem:[%s329 + $0x28] sm:$0xf]
          %v743 = vld [vmem:[%s329 + $0x2c] sm:$0xf]
          %v744 = vld [vmem:[%s329 + $0x30] sm:$0xf]
          %v745 = vld [vmem:[%s329 + $0x34] sm:$0xf]
          %v746 = vld [vmem:[%s329 + $0x38] sm:$0xf]
          %v747 = vld [vmem:[%s329 + $0x3c] sm:$0xf]
          %v748 = vld [vmem:[%s3] sm:$0xf]
          %v749 = vld [vmem:[%s3 + $0x4] sm:$0xf]
          %v750 = vld [vmem:[%s3 + $0x8] sm:$0xf]
          %v751 = vld [vmem:[%s3 + $0xc] sm:$0xf]
          %v752 = vld [vmem:[%s3 + $0x10] sm:$0x1]
          %v753 = vld [vmem:[%s4] sm:$0xf]
          %v754 = vld [vmem:[%s4 + $0x4] sm:$0xf]
          %v755 = vld [vmem:[%s4 + $0x8] sm:$0xf]
          %v756 = vld [vmem:[%s4 + $0xc] sm:$0xf]
          %v757 = vld [vmem:[%s4 + $0x10] sm:$0x1]
          %v763 = vunpack.c.l.b16 %v753
          %v764 = vunpack.c.l.b16 %v754
          %v765 = vunpack.c.l.b16 %v755
          %v766 = vunpack.c.l.b16 %v756
          %v767 = vunpack.c.l.b16 %v757
          %v768 = vpack.c.b16 %v764, %v763
          %v769 = vpack.c.b16 %v766, %v765
          %v770 = vpack.c.b16 %v767, %v767
          %v774 = vsel %vm559, %v724, 0
          %v777 = vsel %vm559, %v725, 0
          %v780 = vsel %vm559, %v726, 0
          %v783 = vsel %vm559, %v727, 0
          %v786 = vsel %vm559, %v728, 0
          %v789 = vsel %vm559, %v729, 0
          %v792 = vsel %vm559, %v730, 0
          %v795 = vsel %vm559, %v731, 0
          %vm797 = vcmask 1040384
          %v798 = vsel 0, 4294967295, 65535
          %v799 = vsel %vm797, %v798, 0
          %v801 = vand.u32 %v770, %v799
          %803 = vmatprep.subr.bf16.mxu0 0
          %804 = vmatpush1.bf16.msra.mxu0 %v768
          %805 = vmatprep.subr.bf16.mxu0 0
          %806 = vmatpush1.bf16.msra.mxu0 %v769
          %807 = vmatprep.subr.bf16.mxu0 0
          %808 = vmatpush1.bf16.msra.mxu0 %v801
          %809 = vmatprep.subr.bf16.mxu0 0
          %810 = vmatpush1.bf16.msra.mxu0 0
          %811 = vmatprep.subr.bf16.mxu0 0
          %812 = vmatpush1.bf16.msra.mxu0 0
          %813 = vmatprep.subr.bf16.mxu0 0
          %814 = vmatpush1.bf16.msra.mxu0 0
          %815 = vmatprep.subr.bf16.mxu0 0
          %816 = vmatpush1.bf16.msra.mxu0 0
          %817 = vmatprep.subr.bf16.mxu0 0
          %818 = vmatpush1.bf16.msra.mxu0 0
          %819 = vmatprep.subr.bf16.mxu0 0
          %820 = vmatpush1.bf16.msra.mxu0 0
          %821 = vmatprep.subr.bf16.mxu0 0
          %822 = vmatpush1.bf16.msra.mxu0 0
          %823 = vmatprep.subr.bf16.mxu0 0
          %824 = vmatpush1.bf16.msra.mxu0 0
          %825 = vmatprep.subr.bf16.mxu0 0
          %826 = vmatpush1.bf16.msra.mxu0 0
          %827 = vmatprep.subr.bf16.mxu0 0
          %828 = vmatpush1.bf16.msra.mxu0 0
          %829 = vmatprep.subr.bf16.mxu0 0
          %830 = vmatpush1.bf16.msra.mxu0 0
          %831 = vmatprep.subr.bf16.mxu0 0
          %832 = vmatpush1.bf16.msra.mxu0 0
          %833 = vmatprep.subr.bf16.mxu0 0
          %834 = vmatpush1.bf16.msra.mxu0 0
          %835 = vmatprep.mubr.bf16.mxu0 0
          %836 = vmatmul.mubr.bf16.gmra.mrb[0].mxu0 %v774
          %v837 = vpop.f32.mrb[0].mxu0
          %v838 = vadd.f32 0.0, %v837
          %v839 = vpop.f32.mrb[0].mxu0
          %v840 = vpop.f32.mrb[0].mxu0
          %v841 = vadd.f32 0.0, %v840
          %v842 = vpop.f32.mrb[0].mxu0
          %843 = vmatprep.mubr.bf16.mxu0 0
          %844 = vmatmul.mubr.bf16.gmra.mrb[0].mxu0 %v777
          %v845 = vpop.f32.mrb[0].mxu0
          %v846 = vadd.f32 0.0, %v845
          %v847 = vpop.f32.mrb[0].mxu0
          %v848 = vpop.f32.mrb[0].mxu0
          %v849 = vadd.f32 0.0, %v848
          %v850 = vpop.f32.mrb[0].mxu0
          %851 = vmatprep.mubr.bf16.mxu0 0
          %852 = vmatmul.mubr.bf16.gmra.mrb[0].mxu0 %v780
          %v853 = vpop.f32.mrb[0].mxu0
          %v854 = vadd.f32 0.0, %v853
          %v855 = vpop.f32.mrb[0].mxu0
          %v856 = vpop.f32.mrb[0].mxu0
          %v857 = vadd.f32 0.0, %v856
          %v858 = vpop.f32.mrb[0].mxu0
          %859 = vmatprep.mubr.bf16.mxu0 0
          %860 = vmatmul.mubr.bf16.gmra.mrb[0].mxu0 %v783
          %v861 = vpop.f32.mrb[0].mxu0
          %v862 = vadd.f32 0.0, %v861
          %v863 = vpop.f32.mrb[0].mxu0
          %v864 = vpop.f32.mrb[0].mxu0
          %v865 = vadd.f32 0.0, %v864
          %v866 = vpop.f32.mrb[0].mxu0
          %867 = vmatprep.mubr.bf16.mxu0 0
          %868 = vmatmul.mubr.bf16.gmra.mrb[0].mxu0 %v786
          %v869 = vpop.f32.mrb[0].mxu0
          %v870 = vadd.f32 0.0, %v869
          %v871 = vpop.f32.mrb[0].mxu0
          %v872 = vpop.f32.mrb[0].mxu0
          %v873 = vadd.f32 0.0, %v872
          %v874 = vpop.f32.mrb[0].mxu0
          %875 = vmatprep.mubr.bf16.mxu0 0
          %876 = vmatmul.mubr.bf16.gmra.mrb[0].mxu0 %v789
          %v877 = vpop.f32.mrb[0].mxu0
          %v878 = vadd.f32 0.0, %v877
          %v879 = vpop.f32.mrb[0].mxu0
          %v880 = vpop.f32.mrb[0].mxu0
          %v881 = vadd.f32 0.0, %v880
          %v882 = vpop.f32.mrb[0].mxu0
          %883 = vmatprep.mubr.bf16.mxu0 0
          %884 = vmatmul.mubr.bf16.gmra.mrb[0].mxu0 %v792
          %v885 = vpop.f32.mrb[0].mxu0
          %v886 = vadd.f32 0.0, %v885
          %v887 = vpop.f32.mrb[0].mxu0
          %v888 = vpop.f32.mrb[0].mxu0
          %v889 = vadd.f32 0.0, %v888
          %v890 = vpop.f32.mrb[0].mxu0
          %891 = vmatprep.mubr.bf16.mxu0 0
          %892 = vmatmul.mubr.bf16.gmra.mrb[0].mxu0 %v795
          %v893 = vpop.f32.mrb[0].mxu0
          %v894 = vadd.f32 0.0, %v893
          %v895 = vpop.f32.mrb[0].mxu0
          %v896 = vpop.f32.mrb[0].mxu0
          %v897 = vadd.f32 0.0, %v896
          %v898 = vpop.f32.mrb[0].mxu0
          %899 = vdwg.mxu0
          %v916 = vunpack.c.l.b16 %v732
          %v917 = vunpack.c.l.b16 %v733
          %v918 = vunpack.c.l.b16 %v734
          %v919 = vunpack.c.l.b16 %v735
          %v920 = vunpack.c.l.b16 %v736
          %v921 = vunpack.c.l.b16 %v737
          %v922 = vunpack.c.l.b16 %v738
          %v923 = vunpack.c.l.b16 %v739
          %v924 = vunpack.c.l.b16 %v740
          %v925 = vunpack.c.l.b16 %v741
          %v926 = vunpack.c.l.b16 %v742
          %v927 = vunpack.c.l.b16 %v743
          %v928 = vunpack.c.l.b16 %v744
          %v929 = vunpack.c.l.b16 %v745
          %v930 = vunpack.c.l.b16 %v746
          %v931 = vunpack.c.l.b16 %v747
          %v932 = vpack.c.b16 %v917, %v916
          %v933 = vpack.c.b16 %v919, %v918
          %v934 = vpack.c.b16 %v921, %v920
          %v935 = vpack.c.b16 %v923, %v922
          %v936 = vpack.c.b16 %v925, %v924
          %v937 = vpack.c.b16 %v927, %v926
          %v938 = vpack.c.b16 %v929, %v928
          %v939 = vpack.c.b16 %v931, %v930
          %v945 = vunpack.c.l.b16 %v748
          %v946 = vunpack.c.l.b16 %v749
          %v947 = vunpack.c.l.b16 %v750
          %v948 = vunpack.c.l.b16 %v751
          %v949 = vunpack.c.l.b16 %v752
          %v950 = vpack.c.b16 %v946, %v945
          %v951 = vpack.c.b16 %v948, %v947
          %v952 = vpack.c.b16 %v949, %v949
          %v956 = vsel %vm559, %v932, 0
          %v959 = vsel %vm559, %v933, 0
          %v962 = vsel %vm559, %v934, 0
          %v965 = vsel %vm559, %v935, 0
          %v968 = vsel %vm559, %v936, 0
          %v971 = vsel %vm559, %v937, 0
          %v974 = vsel %vm559, %v938, 0
          %v977 = vsel %vm559, %v939, 0
          %v980 = vand.u32 %v952, %v799
          %982 = vmatprep.subr.bf16.mxu0 0
          %983 = vmatpush1.bf16.msra.mxu0 %v950
          %984 = vmatprep.subr.bf16.mxu0 0
          %985 = vmatpush1.bf16.msra.mxu0 %v951
          %986 = vmatprep.subr.bf16.mxu0 0
          %987 = vmatpush1.bf16.msra.mxu0 %v980
          %988 = vmatprep.subr.bf16.mxu0 0
          %989 = vmatpush1.bf16.msra.mxu0 0
          %990 = vmatprep.subr.bf16.mxu0 0
          %991 = vmatpush1.bf16.msra.mxu0 0
          %992 = vmatprep.subr.bf16.mxu0 0
          %993 = vmatpush1.bf16.msra.mxu0 0
          %994 = vmatprep.subr.bf16.mxu0 0
          %995 = vmatpush1.bf16.msra.mxu0 0
          %996 = vmatprep.subr.bf16.mxu0 0
          %997 = vmatpush1.bf16.msra.mxu0 0
          %998 = vmatprep.subr.bf16.mxu0 0
          %999 = vmatpush1.bf16.msra.mxu0 0
          %1000 = vmatprep.subr.bf16.mxu0 0
          %1001 = vmatpush1.bf16.msra.mxu0 0
          %1002 = vmatprep.subr.bf16.mxu0 0
          %1003 = vmatpush1.bf16.msra.mxu0 0
          %1004 = vmatprep.subr.bf16.mxu0 0
          %1005 = vmatpush1.bf16.msra.mxu0 0
          %1006 = vmatprep.subr.bf16.mxu0 0
          %1007 = vmatpush1.bf16.msra.mxu0 0
          %1008 = vmatprep.subr.bf16.mxu0 0
          %1009 = vmatpush1.bf16.msra.mxu0 0
          %1010 = vmatprep.subr.bf16.mxu0 0
          %1011 = vmatpush1.bf16.msra.mxu0 0
          %1012 = vmatprep.subr.bf16.mxu0 0
          %1013 = vmatpush1.bf16.msra.mxu0 0
          %1014 = vmatprep.mubr.bf16.mxu0 0
          %1015 = vmatmul.mubr.bf16.gmra.mrb[0].mxu0 %v956
          %v1016 = vpop.f32.mrb[0].mxu0
          %v1017 = vadd.f32 %v838, %v1016
          %v1018 = vpop.f32.mrb[0].mxu0
          %v1019 = vpop.f32.mrb[0].mxu0
          %v1020 = vadd.f32 %v841, %v1019
          %v1021 = vpop.f32.mrb[0].mxu0
          %1022 = vmatprep.mubr.bf16.mxu0 0
          %1023 = vmatmul.mubr.bf16.gmra.mrb[0].mxu0 %v959
          %v1024 = vpop.f32.mrb[0].mxu0
          %v1025 = vadd.f32 %v846, %v1024
          %v1026 = vpop.f32.mrb[0].mxu0
          %v1027 = vpop.f32.mrb[0].mxu0
          %v1028 = vadd.f32 %v849, %v1027
          %v1029 = vpop.f32.mrb[0].mxu0
          %1030 = vmatprep.mubr.bf16.mxu0 0
          %1031 = vmatmul.mubr.bf16.gmra.mrb[0].mxu0 %v962
          %v1032 = vpop.f32.mrb[0].mxu0
          %v1033 = vadd.f32 %v854, %v1032
          %v1034 = vpop.f32.mrb[0].mxu0
          %v1035 = vpop.f32.mrb[0].mxu0
          %v1036 = vadd.f32 %v857, %v1035
          %v1037 = vpop.f32.mrb[0].mxu0
          %1038 = vmatprep.mubr.bf16.mxu0 0
          %1039 = vmatmul.mubr.bf16.gmra.mrb[0].mxu0 %v965
          %v1040 = vpop.f32.mrb[0].mxu0
          %v1041 = vadd.f32 %v862, %v1040
          %v1042 = vpop.f32.mrb[0].mxu0
          %v1043 = vpop.f32.mrb[0].mxu0
          %v1044 = vadd.f32 %v865, %v1043
          %v1045 = vpop.f32.mrb[0].mxu0
          %1046 = vmatprep.mubr.bf16.mxu0 0
          %1047 = vmatmul.mubr.bf16.gmra.mrb[0].mxu0 %v968
          %v1048 = vpop.f32.mrb[0].mxu0
          %v1049 = vadd.f32 %v870, %v1048
          %v1050 = vpop.f32.mrb[0].mxu0
          %v1051 = vpop.f32.mrb[0].mxu0
          %v1052 = vadd.f32 %v873, %v1051
          %v1053 = vpop.f32.mrb[0].mxu0
          %1054 = vmatprep.mubr.bf16.mxu0 0
          %1055 = vmatmul.mubr.bf16.gmra.mrb[0].mxu0 %v971
          %v1056 = vpop.f32.mrb[0].mxu0
          %v1057 = vadd.f32 %v878, %v1056
          %v1058 = vpop.f32.mrb[0].mxu0
          %v1059 = vpop.f32.mrb[0].mxu0
          %v1060 = vadd.f32 %v881, %v1059
          %v1061 = vpop.f32.mrb[0].mxu0
          %1062 = vmatprep.mubr.bf16.mxu0 0
          %1063 = vmatmul.mubr.bf16.gmra.mrb[0].mxu0 %v974
          %v1064 = vpop.f32.mrb[0].mxu0
          %v1065 = vadd.f32 %v886, %v1064
          %v1066 = vpop.f32.mrb[0].mxu0
          %v1067 = vpop.f32.mrb[0].mxu0
          %v1068 = vadd.f32 %v889, %v1067
          %v1069 = vpop.f32.mrb[0].mxu0
          %1070 = vmatprep.mubr.bf16.mxu0 0
          %1071 = vmatmul.mubr.bf16.gmra.mrb[0].mxu0 %v977
          %v1072 = vpop.f32.mrb[0].mxu0
          %v1073 = vadd.f32 %v894, %v1072
          %v1074 = vpop.f32.mrb[0].mxu0
          %v1075 = vpop.f32.mrb[0].mxu0
          %v1076 = vadd.f32 %v897, %v1075
          %v1077 = vpop.f32.mrb[0].mxu0
          %1078 = vdwg.mxu0
          %1079 = vst [vmem:[%s317] sm:$0xff] %v1017
          %1080 = vst [vmem:[%s317 + $0x8] sm:$0xff] %v1020
          %1081 = vst [vmem:[%s317 + $0x10] sm:$0xff] %v1025
          %1082 = vst [vmem:[%s317 + $0x18] sm:$0xff] %v1028
          %1083 = vst [vmem:[%s317 + $0x20] sm:$0xff] %v1033
          %1084 = vst [vmem:[%s317 + $0x28] sm:$0xff] %v1036
          %1085 = vst [vmem:[%s317 + $0x30] sm:$0xff] %v1041
          %1086 = vst [vmem:[%s317 + $0x38] sm:$0xff] %v1044
          %1087 = vst [vmem:[%s317 + $0x40] sm:$0xff] %v1049
          %1088 = vst [vmem:[%s317 + $0x48] sm:$0xff] %v1052
          %1089 = vst [vmem:[%s317 + $0x50] sm:$0xff] %v1057
          %1090 = vst [vmem:[%s317 + $0x58] sm:$0xff] %v1060
          %1091 = vst [vmem:[%s317 + $0x60] sm:$0xff] %v1065
          %1092 = vst [vmem:[%s317 + $0x68] sm:$0xff] %v1068
          %1093 = vst [vmem:[%s317 + $0x70] sm:$0xff] %v1073
          %1094 = vst [vmem:[%s317 + $0x78] sm:$0xff] %v1076
        $region86: #{tpu_custom_call.1} parent=73 // pred_fallthru
          _
        %s1095 = sand.u32 %s161, 1
        %s1096 = scalar_lea.sflag [#allocation5], %s1095
        %s1097 = sand.u32 %s161, 1
        %s1098 = smul.addr %s1097, 128
        %s1099 = scalar_lea.vmem [#allocation4], %s1098
        // Predicated region
        $region87: #{tpu_custom_call.1} parent=73 // pred_check
          %p1100 = pneg %p171
        $region88: #{tpu_custom_call.1} parent=73 // pred_check_branch
          %1102 = sbr.rel (%p1100) target = $region90
        $region89: #{tpu_custom_call.1} parent=73 // pred_region
          %s1103 = smul.u32 16, %s23
          %s1105 = ssub.s32 2048, 2048
          %1106 = vsyncadd %s1096, %s1105
          %s1107 = smul.addr %s1103, 128
          %s1108 = scalar_lea.hbm %s5, %s1107
          %s1109 = sshll.u32 %s1099, 4
          %s1110 = int_to_ptr.vmem [resolvable:$true] %s1109
          %1115 = dma.vmem_to_hbm [thread:$0]  %s1110, 2048, %s1108, %s1096, 128, 128, 8
        $region90: #{tpu_custom_call.1} parent=73 // pred_fallthru
          _
      $region74: #{tpu_custom_call.1} parent=5 // pred_fallthru
        _
      %p1116 = scmp.le.s32.totalorder 2, %s14
      // Predicated region
      $region91: #{tpu_custom_call.1} parent=5 // pred_check
        %p1117 = pneg %p1116
      $region92: #{tpu_custom_call.1} parent=5 // pred_check_branch
        %1119 = sbr.rel (%p1117) target = $region94
      $region93: #{tpu_custom_call.1} parent=5 // pred_region
        %s1120 = ssub.s32 %s14, 2
        // Predicated region
        $region95: #{tpu_custom_call.1} parent=93 // pred_check
          %p1121 = pneg %p177
        $region96: #{tpu_custom_call.1} parent=93 // pred_check_branch
          %1123 = sbr.rel (%p1121) target = $region98
        $region97: #{tpu_custom_call.1} parent=93 // pred_region
          %s1124 = sand.u32 %s162, 1
          %s1125 = scalar_lea.sflag [#allocation5], %s1124
          %s1126 = sand.u32 %s162, 1
          %s1127 = smul.addr %s1126, 128
          %s1128 = scalar_lea.vmem [#allocation4], %s1127
          %1129 = dma.done %s1125, 2048
        $region98: #{tpu_custom_call.1} parent=93 // pred_fallthru
          _
      $region94: #{tpu_custom_call.1} parent=5 // pred_fallthru
        _
    $region6: #{tpu_custom_call.1} parent=1 // loop_footer
      %s18 = sadd.s32 1, %s14
    $region7: #{tpu_custom_call.1} parent=1 // loop_footer_branch
      %13 = sbr.rel target = $region3
    $region8: #{tpu_custom_call.1} parent=1 // loop_exit
      _
    %1130 = vsyncpa [#allocation5], 1
    %s1131 = scalar_lea.sflag [#allocation5], 1
    %1132 = vsyncpa %s1131, 1

</llo_original>
